<compile_context>
chip_gen: v7x
topology: tpu7x:2x2x1
jax: 0.10.0
libtpu: 0.0.40
codegen_flags: <defaults>
</compile_context>

<pallas_src>
import functools

import jax
import jax.numpy as jnp
from jax.experimental import pallas as pl
from jax.experimental.pallas import tpu as pltpu

_EPS = 1e-5


def _round_up(x: int, m: int) -> int:
    return (x + m - 1) // m * m


def _vmem_capacity_bytes() -> int:
    """Physical VMEM per TensorCore (128 MiB v5e/v6e, 64 MiB v7x); safe fallback."""
    try:
        cap = int(pltpu.get_tpu_info().vmem_capacity_bytes)
        if cap > 0:
            return cap
    except Exception:
        pass
    return 64 << 20  # conservative: v7x per-TC VMEM


def _row_entropy(x_tile):
    """Entropy of softmax along the last dim, one value per row. -> (rows, 1) f32."""
    x = x_tile.astype(jnp.float32)          # no-op for f32; in-register upcast for bf16
    m = jnp.max(x, axis=-1, keepdims=True)  # numerically stable softmax
    e = jnp.exp(x - m)
    s = jnp.sum(e, axis=-1, keepdims=True)
    p = e * pl.reciprocal(s, approx=False)  # exact: stay within 1e-5 of the reference
    # NOTE: keep the +1e-5 inside the log to preserve the PyTorch module's exact
    # semantics (the log-free rewrite `log s - sum(p*(x-m))` drops the epsilon).
    return -jnp.sum(p * jnp.log(p + _EPS), axis=-1, keepdims=True)


def _entropy_sum_kernel(x_ref, psum_ref, *, block_rows: int, n_rows: int):
    """mean=True: per-tile partial sum of row entropies (padding rows masked)."""
    en = _row_entropy(x_ref[...])                       # (block_rows, 1) f32
    if n_rows % block_rows != 0:                        # static: only if padded
        i = pl.program_id(0)
        row = i * block_rows + jax.lax.broadcasted_iota(jnp.int32, en.shape, 0)
        en = jnp.where(row < n_rows, en, 0.0)
    tile_sum = jnp.sum(en, axis=0, keepdims=True)       # (1, 1)
    # (8,128) is always a legal TPU tile; writeback is num_tiles * 4 KiB total.
    psum_ref[...] = jnp.broadcast_to(tile_sum, psum_ref.shape)


def _entropy_rows_kernel(x_ref, en_ref):
    """mean=False: per-row entropies."""
    # TODO(synk): lane-dense (1, block_rows) store (in-kernel XLU transpose of the
    # (block_rows, 1) result) would avoid masked vst.msk stores when C is small.
    en_ref[...] = _row_entropy(x_ref[...]).astype(en_ref.dtype)


def _pallas_entropy_2d(x2d: jax.Array, mean: bool):
    n_rows, n_cols = x2d.shape
    cap = _vmem_capacity_bytes()

    # Tile sizing: the f32 working set per row is (C rounded up to 128 lanes) * 4 B.
    # Budget ~cap/16 per input tile (=> ~cap/8 double-buffered, plus headroom for
    # the compiler's full-tile f32 temporaries), clamped to [4 MiB, 16 MiB].
    padded_cols = _round_up(n_cols, 128)
    tile_budget = min(max(cap // 16, 4 << 20), 16 << 20)
    max_rows = max(tile_budget // (padded_cols * 4), 8)

    if n_rows <= max_rows:
        block_rows = _round_up(n_rows, 8)
    else:
        block_rows = (max_rows // 8) * 8
    padded_rows = _round_up(n_rows, block_rows)
    num_tiles = padded_rows // block_rows

    if padded_rows != n_rows:
        x2d = jnp.pad(x2d, ((0, padded_rows - n_rows), (0, 0)))

    compiler_params = pltpu.CompilerParams(
        dimension_semantics=("parallel",),            # independent tiles -> megacore-shardable
        vmem_limit_bytes=min(cap // 2, 64 << 20),
    )
    in_specs = [pl.BlockSpec((block_rows, n_cols), lambda i: (i, 0))]

    if mean:
        kernel = functools.partial(
            _entropy_sum_kernel, block_rows=block_rows, n_rows=n_rows)
        psums = pl.pallas_call(
            kernel,
            grid=(num_tiles,),
            in_specs=in_specs,
            out_specs=pl.BlockSpec((8, 128), lambda i: (i, 0)),
            out_shape=jax.ShapeDtypeStruct((num_tiles * 8, 128), jnp.float32),
            compiler_params=compiler_params,
        )(x2d)
        tile_sums = psums.reshape(num_tiles, 8, 128)[:, 0, 0]   # one exact sum per tile
        return jnp.sum(tile_sums) / jnp.float32(n_rows)

    en = pl.pallas_call(
        _entropy_rows_kernel,
        grid=(num_tiles,),
        in_specs=in_specs,
        out_specs=pl.BlockSpec((block_rows, 1), lambda i: (i, 0)),
        out_shape=jax.ShapeDtypeStruct((padded_rows, 1), jnp.float32),
        compiler_params=compiler_params,
    )(x2d)
    return en[:n_rows, 0]


def entropy(x: jax.Array, mean: bool = True) -> jax.Array:
    """Pallas equivalent of Entropy.forward: softmax over dim 1, entropy, optional mean."""
    if x.ndim < 2:
        raise ValueError("Entropy expects input of shape (N, C, ...)")
    if x.ndim == 2:
        x2d = x
        lead_shape = (x.shape[0],)
    else:
        # softmax is over dim 1: move the class dim last, flatten everything else to rows
        perm = (0,) + tuple(range(2, x.ndim)) + (1,)
        xt = jnp.transpose(x, perm)
        lead_shape = xt.shape[:-1]
        x2d = xt.reshape(-1, x.shape[1])

    res = _pallas_entropy_2d(x2d, mean)
    if mean:
        return res
    return res.reshape(lead_shape)


def _entropy_ref(x: jax.Array, mean: bool = True):
    p = jax.nn.softmax(x.astype(jnp.float32), axis=1)
    en = -jnp.sum(p * jnp.log(p + _EPS), axis=1)
    return jnp.mean(en) if mean else en


if __name__ == "__main__":
    key = jax.random.PRNGKey(0)
    k1, k2, k3 = jax.random.split(key, 3)

    # 2-D logits (N, C)
    x2d = jax.random.normal(k1, (8, 32), dtype=jnp.float32)
    # 4-D logits (N, C, H, W) -- softmax over the channel dim, as in the module
    x4d = jax.random.normal(k2, (2, 4, 16, 16), dtype=jnp.float32)
    # ragged batch (exercises the padding + in-kernel masking path)
    xrg = jax.random.normal(k3, (10, 256), dtype=jnp.float32)

    for x in (x2d, x4d, xrg):
        got_mean = jax.block_until_ready(entropy(x, mean=True))
        got_rows = jax.block_until_ready(entropy(x, mean=False))
        ref_mean = _entropy_ref(x, mean=True)
        ref_rows = _entropy_ref(x, mean=False)
        assert got_rows.shape == ref_rows.shape, (got_rows.shape, ref_rows.shape)
        assert jnp.allclose(got_mean, ref_mean, atol=3e-5, rtol=3e-5), (x.shape, got_mean, ref_mean)
        assert jnp.allclose(got_rows, ref_rows, atol=3e-5, rtol=3e-5), (x.shape,)

    print("KERNEL_OK")
</pallas_src>

<mosaic_0001>
module attributes {stable_mosaic.version = 11 : i64} {
  func.func @_entropy_sum_kernel(%arg0: i32, %arg1: memref<8x32xf32, #tpu.memory_space<vmem>>, %arg2: memref<8x128xf32, #tpu.memory_space<vmem>>) attributes {dimension_semantics = [#tpu.dimension_semantics<parallel>], iteration_bounds = array<i64: 1>, scalar_prefetch = 0 : i64, scratch_operands = 0 : i64, tpu.core_type = #tpu.core_type<tc>, window_params = [{transform_indices = @transform_0, window_bounds = array<i64: 8, 32>}, {transform_indices = @transform_1, window_bounds = array<i64: 8, 128>}]} {
    %c0 = arith.constant 0 : index
    %c0_0 = arith.constant 0 : index
    %0 = vector.load %arg1[%c0, %c0_0] : memref<8x32xf32, #tpu.memory_space<vmem>>, vector<8x32xf32>
    %cst = arith.constant dense<0xFF800000> : vector<8xf32>
    %1 = vector.multi_reduction <maximumf>, %0, %cst [1] : vector<8x32xf32> to vector<8xf32>
    %2 = vector.shape_cast %1 : vector<8xf32> to vector<8x1xf32>
    %3 = vector.broadcast %2 : vector<8x1xf32> to vector<8x32xf32>
    %4 = arith.subf %0, %3 : vector<8x32xf32>
    %5 = math.exp %4 : vector<8x32xf32>
    %cst_1 = arith.constant dense<0.000000e+00> : vector<8xf32>
    %6 = vector.multi_reduction <add>, %5, %cst_1 [1] : vector<8x32xf32> to vector<8xf32>
    %7 = vector.shape_cast %6 : vector<8xf32> to vector<8x1xf32>
    %8 = tpu.reciprocal %7 : vector<8x1xf32> -> vector<8x1xf32>
    %9 = vector.broadcast %8 : vector<8x1xf32> to vector<8x32xf32>
    %10 = arith.mulf %5, %9 : vector<8x32xf32>
    %cst_2 = arith.constant 9.99999974E-6 : f32
    %11 = vector.broadcast %cst_2 : f32 to vector<8x32xf32>
    %12 = arith.addf %10, %11 : vector<8x32xf32>
    %13 = math.log %12 : vector<8x32xf32>
    %14 = arith.mulf %10, %13 : vector<8x32xf32>
    %cst_3 = arith.constant dense<0.000000e+00> : vector<8xf32>
    %15 = vector.multi_reduction <add>, %14, %cst_3 [1] : vector<8x32xf32> to vector<8xf32>
    %16 = vector.shape_cast %15 : vector<8xf32> to vector<8x1xf32>
    %cst_4 = arith.constant 0.000000e+00 : f32
    %17 = vector.broadcast %cst_4 : f32 to vector<8x1xf32>
    %18 = arith.subf %17, %16 : vector<8x1xf32>
    %cst_5 = arith.constant dense<0.000000e+00> : vector<1xf32>
    %19 = vector.multi_reduction <add>, %18, %cst_5 [0] : vector<8x1xf32> to vector<1xf32>
    %20 = vector.shape_cast %19 : vector<1xf32> to vector<1x1xf32>
    %21 = vector.shape_cast %20 : vector<1x1xf32> to vector<1x1xf32>
    %22 = vector.broadcast %21 : vector<1x1xf32> to vector<8x128xf32>
    %c0_6 = arith.constant 0 : index
    %c0_7 = arith.constant 0 : index
    %23 = vector.load %arg2[%c0_6, %c0_7] : memref<8x128xf32, #tpu.memory_space<vmem>>, vector<8x128xf32>
    tpu.vector_store %arg2[%c0_6, %c0_7], %22 {strides = array<i32>} : memref<8x128xf32, #tpu.memory_space<vmem>>, vector<8x128xf32>,
    return
  }
  func.func @transform_0(%arg0: i32) -> (i32, i32) {
    %c0_i32 = arith.constant 0 : i32
    %c0_i32_0 = arith.constant 0 : i32
    return %arg0, %c0_i32 : i32, i32
  }
  func.func @transform_1(%arg0: i32) -> (i32, i32) {
    %c0_i32 = arith.constant 0 : i32
    %c0_i32_0 = arith.constant 0 : i32
    return %arg0, %c0_i32 : i32, i32
  }
}

</mosaic_0001>

<llo_original>
// kernel: tpu_custom_call.1
$region0: #{tpu_custom_call.1}
  #allocation0 [shape = 'u32[]', space=smem, size = 0x4, offset = 0x4, fixed_abs, tag = 'smem constant byte address 0x4 - core index']
  #allocation1 [shape = 'u32[144,128]{1,0:T(1,128)}', space=vmem, size = 0x12000, scoped, tag = 'internal scratch']
  %s0 = inlined_call_operand.hbm [shape: f32[8,32], index: 0, kind: input, shape index: {}]
  %s1 = inlined_call_operand.hbm [shape: f32[8,128], index: 1, kind: output, shape index: {}]
  %s2 = sld [smem:[#allocation0]]
  $region18: #{tpu_custom_call.1} parent=0
    _
  %s4 = ssub.s32 1, %s2
  %s5 = scalar_select 0, %s4, %s2
  $region1: #{tpu_custom_call.1} parent=0
    #allocation2 [shape = 'u8[4096]{0}', space=vmem, size = 0x1000, scoped, tag = 'input window, operand 0, single buffered']
    #allocation3 [shape = 's32[1]{0}', space=sflag, size = 0x4, scoped, tag = 'scoped memory for tpu_custom_call.1']
    #allocation4 [shape = 's32[1]{0}', space=sflag, size = 0x4, scoped, tag = 'scoped memory for tpu_custom_call.1']
    #allocation5 [shape = 'u8[4096]{0}', space=vmem, size = 0x1000, scoped, tag = 'output window, operand 0, single buffered']
    %6 = vsyncpa [#allocation3], 0
    %7 = vsyncpa [#allocation4], 0
    // Predicated region
    $region2: #{tpu_custom_call.1} parent=1 // pred_check
      _
    $region3: #{tpu_custom_call.1} parent=1 // pred_check_branch
      %9 = sbr.rel (0) target = $region5
    $region4: #{tpu_custom_call.1} parent=1 // pred_region
      %s11 = ssub.s32 128, 128
      %12 = vsyncadd [#allocation3], %s11
      %s14 = sshll.u32 [#allocation2], 4
      %s15 = int_to_ptr.vmem [resolvable:$true] %s14
      %17 = dma.hbm_to_vmem [thread:$0]  %s0, 128, %s15, [#allocation3]
    $region5: #{tpu_custom_call.1} parent=1 // pred_fallthru
      _
    // Predicated region
    $region6: #{tpu_custom_call.1} parent=1 // pred_check
      _
    $region7: #{tpu_custom_call.1} parent=1 // pred_check_branch
      %19 = sbr.rel (0) target = $region9
    $region8: #{tpu_custom_call.1} parent=1 // pred_region
      %20 = dma.done [#allocation3], 128
    $region9: #{tpu_custom_call.1} parent=1 // pred_fallthru
      _
    %v21 = vld [vmem:[#allocation2] sm:$0xff]
    %vm22 = vcmask 261120
    %v23 = vsel %vm22, %v21, -inf
    %24 = vmax.xlane.f32.xlu0 %v23
    %v25 = vpop.xlane.xlu0 %24
    %v26 = vsub.f32 %v21, %v25
    %v27 = vmul.f32 %v26, 1.442695
    %v28 = vpow.pop %v27
    %v29 = vsel %vm22, %v28, 0.0
    %30 = vadd.xlane.f32.xlu0 %v29
    %v31 = vpop.xlane.xlu0 %30
    %v32 = vrcp.pop %v31
    %v33 = vmul.f32 %v28, %v32
    %v34 = vadd.f32 %v33, 1e-05
    %v35 = vlog2.pop %v34
    %v36 = vmul.f32 %v35, 0.6931472
    %v37 = vmul.f32 %v33, %v36
    %v38 = vsel %vm22, %v37, 0.0
    %39 = vadd.xlane.f32.xlu0 %v38
    %v40 = vpop.xlane.xlu0 %39
    %v41 = vsub.f32 0.0, %v40
    %v42 = vrot.slane %v41, 4
    %v43 = vadd.f32 %v41, %v42
    %v44 = vrot.slane %v43, 2
    %v45 = vadd.f32 %v43, %v44
    %v46 = vrot.slane %v45, 1
    %v47 = vadd.f32 %v45, %v46
    %48 = vst [vmem:[#allocation5] sm:$0xff] %v47
    // Predicated region
    $region10: #{tpu_custom_call.1} parent=1 // pred_check
      _
    $region11: #{tpu_custom_call.1} parent=1 // pred_check_branch
      %50 = sbr.rel (0) target = $region13
    $region12: #{tpu_custom_call.1} parent=1 // pred_region
      %s52 = ssub.s32 128, 128
      %53 = vsyncadd [#allocation4], %s52
      %s55 = sshll.u32 [#allocation5], 4
      %s56 = int_to_ptr.vmem [resolvable:$true] %s55
      %58 = dma.vmem_to_hbm [thread:$0]  %s56, 128, %s1, [#allocation4]
    $region13: #{tpu_custom_call.1} parent=1 // pred_fallthru
      _
    // Predicated region
    $region14: #{tpu_custom_call.1} parent=1 // pred_check
      _
    $region15: #{tpu_custom_call.1} parent=1 // pred_check_branch
      %60 = sbr.rel (0) target = $region17
    $region16: #{tpu_custom_call.1} parent=1 // pred_region
      %61 = dma.done [#allocation4], 128
    $region17: #{tpu_custom_call.1} parent=1 // pred_fallthru
      _
    %62 = vsyncpa [#allocation3], 1
    %63 = vsyncpa [#allocation4], 1

</llo_original>
